<compile_context>
chip_gen: v7x
topology: tpu7x:2x2x1
jax: 0.10.0
libtpu: 0.0.40
codegen_flags: <defaults>
</compile_context>

<pallas_src>
import functools

import jax
import jax.numpy as jnp
from jax.experimental import pallas as pl
from jax.experimental.pallas import tpu as pltpu


def _focal_loss_kernel(logits_ref, tgt_ref, out_ref, *,
                       gamma, alpha, n_splits, blocks_per_split,
                       need_mask, row_blocked, tile_rows, tile_lanes,
                       rows_total, spatial):
    """One (C, R, L) tile of one (batch, spatial-split).

    logits_ref: (C, R, L) float    tgt_ref: (1, R, L) int32
    out_ref   : (1, L) float32 accumulator, revisited across grid axis 1.
    """
    @pl.when(pl.program_id(1) == 0)
    def _():
        out_ref[...] = jnp.zeros_like(out_ref)

    n_cls = logits_ref.shape[0]

    def cls_slab(c):
        return logits_ref[c:c + 1].astype(jnp.float32)        # (1, R, L)

    # class-axis max (unrolled over the small, compile-time class count)
    m = cls_slab(0)
    for c in range(1, n_cls):
        m = jnp.maximum(m, cls_slab(c))

    # softmax denominator + target-class gather in one streamed pass;
    # no (C, R, L) logp / exp intermediates are materialised.
    tgt = tgt_ref[...]                                         # (1, R, L) int32
    sumexp = jnp.zeros_like(m)
    z_t = jnp.zeros_like(m)
    e_t = jnp.zeros_like(m)
    at = jnp.zeros_like(m) if alpha is not None else None
    for c in range(n_cls):
        zc = cls_slab(c) - m
        ec = jnp.exp(zc)
        sumexp = sumexp + ec
        is_c = tgt == c
        z_t = jnp.where(is_c, zc, z_t)
        e_t = jnp.where(is_c, ec, e_t)
        if alpha is not None:
            at = jnp.where(is_c, float(alpha[c]), at)

    logpt = z_t - jnp.log(sumexp)              # log_softmax gathered at target
    pt = e_t / sumexp                          # == exp(logpt), without a 2nd exp

    if alpha is not None:
        logpt = logpt * at

    # clamp avoids NaN from (1 - pt) ** gamma when pt rounds slightly above 1
    one_m_pt = jnp.maximum(1.0 - pt, 0.0)
    g = float(gamma)
    if g == 0.0:
        w = jnp.ones_like(pt)
    elif g == round(g) and 0.0 < g <= 8.0:
        w = one_m_pt                           # integer gamma: repeated multiply
        for _ in range(int(g) - 1):
            w = w * one_m_pt
    else:
        w = one_m_pt ** g
    loss = -1.0 * w * logpt                                    # (1, R, L)

    # mask out-of-extent positions of a ragged tail block (compile-time gated)
    if need_mask:
        if n_splits > 1:
            sp_blk = (pl.program_id(0) % n_splits) * blocks_per_split \
                     + pl.program_id(1)
        else:
            sp_blk = pl.program_id(1)
        if row_blocked:
            r = jax.lax.broadcasted_iota(jnp.int32, loss.shape, 1)
            valid = (sp_blk * tile_rows + r) < rows_total
        else:
            l = jax.lax.broadcasted_iota(jnp.int32, loss.shape, 2)
            valid = (sp_blk * tile_lanes + l) < spatial
        loss = jnp.where(valid, loss, 0.0)

    # in-kernel reduction over rows -> tiny lane-dense accumulator
    out_ref[...] += jnp.sum(loss, axis=1)                      # (1, L)


def _pick_rows(rows_total, n_cls):
    """Rows per block so the f32 logits block is ~3 MiB (rows multiple of 8)."""
    target_bytes = 3 * 1024 * 1024
    rows = target_bytes // (n_cls * 128 * 4)
    rows = max(8, (rows // 8) * 8)
    return min(rows_total, rows)


def _pick_lanes(spatial, n_cls):
    """Fallback (S % 128 != 0) lane tile; accounts for 8-sublane VMEM padding."""
    pad_c = -(-n_cls // 8) * 8
    per_elem_vmem = (pad_c + 8) * 4            # logits + targets bytes / pixel
    budget = 4 * 1024 * 1024
    lanes = max(128, (budget // per_elem_vmem) // 128 * 128)
    return min(spatial, lanes)


def _vmem_limit_bytes():
    # Generation-aware cap: stays well inside v7x's 64 MiB physical VMEM and
    # raises v5e's 16 MiB default scoped limit; harmless headroom on v6e.
    try:
        cap = pltpu.get_tpu_info().vmem_capacity_bytes
        return int(min(48 * 1024 * 1024, (cap * 3) // 4))
    except Exception:
        return 48 * 1024 * 1024


def focal_loss(logits_nchw, target_nhw, *, gamma=0.0, alpha=None,
               size_average=True, block_rows=None, block_lanes=None):
    """Pallas TPU implementation of FocalLoss.forward.

    logits_nchw: float array (N, C, H, W)
    target_nhw : int   array (N, H, W), values in [0, C)
    """
    N, C, H, W = logits_nchw.shape
    S = H * W

    # alpha table, mirroring the torch module __init__ (baked in as constants)
    if alpha is None:
        alpha_tuple = None
    elif isinstance(alpha, (float, int)):
        if C != 2:
            raise ValueError("scalar alpha builds a length-2 table; requires C == 2")
        alpha_tuple = (float(alpha), 1.0 - float(alpha))
    else:
        seq = alpha.tolist() if hasattr(alpha, "tolist") else list(alpha)
        alpha_tuple = tuple(float(a) for a in seq)
        if len(alpha_tuple) != C:
            raise ValueError("per-class alpha must have length C")

    t32 = target_nhw.astype(jnp.int32)
    row_blocked = (S % 128 == 0)

    if row_blocked:
        rows_total = S // 128
        x = logits_nchw.reshape(N, C, rows_total, 128)   # free reshape, NCHW order
        t = t32.reshape(N, 1, rows_total, 128)
        tile_rows = block_rows if block_rows is not None else _pick_rows(rows_total, C)
        tile_rows = min(tile_rows, rows_total)
        n_blocks = pl.cdiv(rows_total, tile_rows)
        acc_w = 128
        tile_lanes = 128
        need_mask = (rows_total % tile_rows) != 0
        blk_logits = (None, C, tile_rows, 128)
        blk_tgt = (None, 1, tile_rows, 128)
    else:
        # rare fallback: no HBM padding pass -- tile the lane axis directly
        rows_total = 1
        x = logits_nchw.reshape(N, C, 1, S)
        t = t32.reshape(N, 1, 1, S)
        tile_lanes = block_lanes if block_lanes is not None else _pick_lanes(S, C)
        tile_lanes = min(tile_lanes, S)
        n_blocks = pl.cdiv(S, tile_lanes)
        acc_w = tile_lanes
        tile_rows = 1
        need_mask = (S % tile_lanes) != 0
        blk_logits = (None, C, 1, tile_lanes)
        blk_tgt = (None, 1, 1, tile_lanes)

    # Split the spatial block range into two "parallel" halves when possible so
    # v7x's two TensorCores stay busy even for N == 1 / odd N.
    n_splits = 2 if (n_blocks >= 2 and n_blocks % 2 == 0) else 1
    blocks_per_split = n_blocks // n_splits

    def in_map(b, s):
        if n_splits > 1:
            batch = b // n_splits
            sp = (b % n_splits) * blocks_per_split + s
        else:
            batch, sp = b, s
        if row_blocked:
            return (batch, 0, sp, 0)
        return (batch, 0, 0, sp)

    kernel = functools.partial(
        _focal_loss_kernel,
        gamma=float(gamma), alpha=alpha_tuple,
        n_splits=n_splits, blocks_per_split=blocks_per_split,
        need_mask=need_mask, row_blocked=row_blocked,
        tile_rows=tile_rows, tile_lanes=tile_lanes,
        rows_total=rows_total, spatial=S)

    partials = pl.pallas_call(
        kernel,
        out_shape=jax.ShapeDtypeStruct((N * n_splits, 1, acc_w), jnp.float32),
        grid=(N * n_splits, blocks_per_split),
        in_specs=[pl.BlockSpec(blk_logits, in_map),
                  pl.BlockSpec(blk_tgt, in_map)],
        out_specs=pl.BlockSpec((None, 1, acc_w), lambda b, s: (b, 0, 0)),
        compiler_params=pltpu.CompilerParams(
            dimension_semantics=("parallel", "arbitrary"),
            vmem_limit_bytes=_vmem_limit_bytes()),
    )(x, t)

    total = jnp.sum(partials)
    return total / (N * S) if size_average else total


def _focal_loss_ref(logits_nchw, target_nhw, *, gamma, alpha, size_average):
    """Pure-JAX reference (mirrors the PyTorch forward)."""
    N, C, H, W = logits_nchw.shape
    x = jnp.transpose(logits_nchw, (0, 2, 3, 1)).reshape(-1, C).astype(jnp.float32)
    t = target_nhw.reshape(-1).astype(jnp.int32)
    logp = jax.nn.log_softmax(x, axis=-1)
    logpt = jnp.take_along_axis(logp, t[:, None], axis=1)[:, 0]
    pt = jnp.exp(logpt)
    if alpha is not None:
        if isinstance(alpha, (float, int)):
            a = jnp.asarray([alpha, 1.0 - alpha], jnp.float32)
        else:
            a = jnp.asarray(alpha, jnp.float32)
        logpt = logpt * a[t]
    loss = -1.0 * (1.0 - pt) ** gamma * logpt
    return loss.mean() if size_average else loss.sum()


if __name__ == "__main__":
    key = jax.random.PRNGKey(0)

    # 1) main path: S = 256 (multiple of 128), per-class alpha, integer gamma
    k1, k2, key = jax.random.split(key, 3)
    N, C, H, W = 2, 4, 16, 16
    logits = jax.random.normal(k1, (N, C, H, W), dtype=jnp.float32)
    target = jax.random.randint(k2, (N, H, W), 0, C, dtype=jnp.int32)
    got = jax.block_until_ready(
        focal_loss(logits, target, gamma=2.0, alpha=[0.1, 0.2, 0.3, 0.4],
                   size_average=True))
    ref = _focal_loss_ref(logits, target, gamma=2.0, alpha=[0.1, 0.2, 0.3, 0.4],
                          size_average=True)
    assert jnp.allclose(got, ref, rtol=1e-4, atol=1e-6), (got, ref)

    # 2) fallback path: S = 25 (not a multiple of 128), fractional gamma, sum
    k1, k2, key = jax.random.split(key, 3)
    N, C, H, W = 1, 3, 5, 5
    logits = jax.random.normal(k1, (N, C, H, W), dtype=jnp.float32)
    target = jax.random.randint(k2, (N, H, W), 0, C, dtype=jnp.int32)
    got = jax.block_until_ready(
        focal_loss(logits, target, gamma=1.5, alpha=None, size_average=False))
    ref = _focal_loss_ref(logits, target, gamma=1.5, alpha=None,
                          size_average=False)
    assert jnp.allclose(got, ref, rtol=1e-4, atol=1e-6), (got, ref)

    # 3) multi-block: ragged tail mask + 2-way spatial split + scalar alpha
    k1, k2, key = jax.random.split(key, 3)
    N, C, H, W = 2, 2, 32, 48            # S = 1536 -> 12 rows of 128
    logits = jax.random.normal(k1, (N, C, H, W), dtype=jnp.float32)
    target = jax.random.randint(k2, (N, H, W), 0, C, dtype=jnp.int32)
    got = jax.block_until_ready(
        focal_loss(logits, target, gamma=1.0, alpha=0.25, size_average=True,
                   block_rows=8))
    ref = _focal_loss_ref(logits, target, gamma=1.0, alpha=0.25,
                          size_average=True)
    assert jnp.allclose(got, ref, rtol=1e-4, atol=1e-6), (got, ref)

    print("KERNEL_OK")
</pallas_src>

<mosaic_0001>
module attributes {stable_mosaic.version = 11 : i64} {
  func.func @_focal_loss_kernel(%arg0: i32, %arg1: i32, %arg2: memref<1x4x2x128xf32, #tpu.memory_space<vmem>>, %arg3: memref<1x1x2x128xi32, #tpu.memory_space<vmem>>, %arg4: memref<1x1x128xf32, #tpu.memory_space<vmem>>) attributes {dimension_semantics = [#tpu.dimension_semantics<parallel>, #tpu.dimension_semantics<arbitrary>], iteration_bounds = array<i64: 2, 1>, scalar_prefetch = 0 : i64, scratch_operands = 0 : i64, tpu.core_type = #tpu.core_type<tc>, window_params = [{transform_indices = @transform_0, window_bounds = array<i64: 1, 4, 2, 128>}, {transform_indices = @transform_1, window_bounds = array<i64: 1, 1, 2, 128>}, {transform_indices = @transform_2, window_bounds = array<i64: 1, 1, 128>}]} {
    %c0_i32 = arith.constant 0 : i32
    %0 = arith.cmpi eq, %arg1, %c0_i32 : i32
    %1 = arith.extui %0 : i1 to i32
    %c0_i32_0 = arith.constant 0 : i32
    %2 = arith.cmpi ne, %1, %c0_i32_0 : i32
    scf.if %2 {
      %cst_51 = arith.constant 0.000000e+00 : f32
      %83 = vector.broadcast %cst_51 : f32 to vector<1x128xf32>
      %c0_52 = arith.constant 0 : index
      %c0_53 = arith.constant 0 : index
      %c0_54 = arith.constant 0 : index
      %84 = vector.load %arg4[%c0_52, %c0_53, %c0_54] : memref<1x1x128xf32, #tpu.memory_space<vmem>>, vector<1x1x128xf32>
      %85 = vector.shape_cast %84 : vector<1x1x128xf32> to vector<1x128xf32>
      %86 = vector.shape_cast %83 : vector<1x128xf32> to vector<1x1x128xf32>
      tpu.vector_store %arg4[%c0_52, %c0_53, %c0_54], %86 {strides = array<i32>} : memref<1x1x128xf32, #tpu.memory_space<vmem>>, vector<1x1x128xf32>,
    } else {
    }
    %c0 = arith.constant 0 : index
    %c0_1 = arith.constant 0 : index
    %c0_2 = arith.constant 0 : index
    %c0_3 = arith.constant 0 : index
    %3 = vector.load %arg2[%c0, %c0_1, %c0_2, %c0_3] : memref<1x4x2x128xf32, #tpu.memory_space<vmem>>, vector<1x1x2x128xf32>
    %4 = vector.shape_cast %3 : vector<1x1x2x128xf32> to vector<1x2x128xf32>
    %c0_4 = arith.constant 0 : index
    %c1 = arith.constant 1 : index
    %c0_5 = arith.constant 0 : index
    %c0_6 = arith.constant 0 : index
    %5 = vector.load %arg2[%c0_4, %c1, %c0_5, %c0_6] : memref<1x4x2x128xf32, #tpu.memory_space<vmem>>, vector<1x1x2x128xf32>
    %6 = vector.shape_cast %5 : vector<1x1x2x128xf32> to vector<1x2x128xf32>
    %7 = arith.maximumf %4, %6 : vector<1x2x128xf32>
    %c0_7 = arith.constant 0 : index
    %c2 = arith.constant 2 : index
    %c0_8 = arith.constant 0 : index
    %c0_9 = arith.constant 0 : index
    %8 = vector.load %arg2[%c0_7, %c2, %c0_8, %c0_9] : memref<1x4x2x128xf32, #tpu.memory_space<vmem>>, vector<1x1x2x128xf32>
    %9 = vector.shape_cast %8 : vector<1x1x2x128xf32> to vector<1x2x128xf32>
    %10 = arith.maximumf %7, %9 : vector<1x2x128xf32>
    %c0_10 = arith.constant 0 : index
    %c3 = arith.constant 3 : index
    %c0_11 = arith.constant 0 : index
    %c0_12 = arith.constant 0 : index
    %11 = vector.load %arg2[%c0_10, %c3, %c0_11, %c0_12] : memref<1x4x2x128xf32, #tpu.memory_space<vmem>>, vector<1x1x2x128xf32>
    %12 = vector.shape_cast %11 : vector<1x1x2x128xf32> to vector<1x2x128xf32>
    %13 = arith.maximumf %10, %12 : vector<1x2x128xf32>
    %c0_13 = arith.constant 0 : index
    %c0_14 = arith.constant 0 : index
    %c0_15 = arith.constant 0 : index
    %c0_16 = arith.constant 0 : index
    %14 = vector.load %arg3[%c0_13, %c0_14, %c0_15, %c0_16] : memref<1x1x2x128xi32, #tpu.memory_space<vmem>>, vector<1x1x2x128xi32>
    %15 = vector.shape_cast %14 : vector<1x1x2x128xi32> to vector<1x2x128xi32>
    %cst = arith.constant 0.000000e+00 : f32
    %16 = vector.broadcast %cst : f32 to vector<1x2x128xf32>
    %cst_17 = arith.constant 0.000000e+00 : f32
    %17 = vector.broadcast %cst_17 : f32 to vector<1x2x128xf32>
    %cst_18 = arith.constant 0.000000e+00 : f32
    %18 = vector.broadcast %cst_18 : f32 to vector<1x2x128xf32>
    %cst_19 = arith.constant 0.000000e+00 : f32
    %19 = vector.broadcast %cst_19 : f32 to vector<1x2x128xf32>
    %c0_20 = arith.constant 0 : index
    %c0_21 = arith.constant 0 : index
    %c0_22 = arith.constant 0 : index
    %c0_23 = arith.constant 0 : index
    %20 = vector.load %arg2[%c0_20, %c0_21, %c0_22, %c0_23] : memref<1x4x2x128xf32, #tpu.memory_space<vmem>>, vector<1x1x2x128xf32>
    %21 = vector.shape_cast %20 : vector<1x1x2x128xf32> to vector<1x2x128xf32>
    %22 = arith.subf %21, %13 : vector<1x2x128xf32>
    %23 = math.exp %22 : vector<1x2x128xf32>
    %24 = arith.addf %16, %23 : vector<1x2x128xf32>
    %c0_i32_24 = arith.constant 0 : i32
    %25 = vector.broadcast %c0_i32_24 : i32 to vector<1x2x128xi32>
    %26 = arith.cmpi eq, %15, %25 : vector<1x2x128xi32>
    %27 = arith.select %26, %22, %17 : vector<1x2x128xi1>, vector<1x2x128xf32>
    %28 = arith.select %26, %23, %18 : vector<1x2x128xi1>, vector<1x2x128xf32>
    %cst_25 = arith.constant 1.000000e-01 : f32
    %29 = vector.broadcast %cst_25 : f32 to vector<1x2x128xf32>
    %30 = arith.select %26, %29, %19 : vector<1x2x128xi1>, vector<1x2x128xf32>
    %c0_26 = arith.constant 0 : index
    %c1_27 = arith.constant 1 : index
    %c0_28 = arith.constant 0 : index
    %c0_29 = arith.constant 0 : index
    %31 = vector.load %arg2[%c0_26, %c1_27, %c0_28, %c0_29] : memref<1x4x2x128xf32, #tpu.memory_space<vmem>>, vector<1x1x2x128xf32>
    %32 = vector.shape_cast %31 : vector<1x1x2x128xf32> to vector<1x2x128xf32>
    %33 = arith.subf %32, %13 : vector<1x2x128xf32>
    %34 = math.exp %33 : vector<1x2x128xf32>
    %35 = arith.addf %24, %34 : vector<1x2x128xf32>
    %c1_i32 = arith.constant 1 : i32
    %36 = vector.broadcast %c1_i32 : i32 to vector<1x2x128xi32>
    %37 = arith.cmpi eq, %15, %36 : vector<1x2x128xi32>
    %38 = arith.select %37, %33, %27 : vector<1x2x128xi1>, vector<1x2x128xf32>
    %39 = arith.select %37, %34, %28 : vector<1x2x128xi1>, vector<1x2x128xf32>
    %cst_30 = arith.constant 2.000000e-01 : f32
    %40 = vector.broadcast %cst_30 : f32 to vector<1x2x128xf32>
    %41 = arith.select %37, %40, %30 : vector<1x2x128xi1>, vector<1x2x128xf32>
    %c0_31 = arith.constant 0 : index
    %c2_32 = arith.constant 2 : index
    %c0_33 = arith.constant 0 : index
    %c0_34 = arith.constant 0 : index
    %42 = vector.load %arg2[%c0_31, %c2_32, %c0_33, %c0_34] : memref<1x4x2x128xf32, #tpu.memory_space<vmem>>, vector<1x1x2x128xf32>
    %43 = vector.shape_cast %42 : vector<1x1x2x128xf32> to vector<1x2x128xf32>
    %44 = arith.subf %43, %13 : vector<1x2x128xf32>
    %45 = math.exp %44 : vector<1x2x128xf32>
    %46 = arith.addf %35, %45 : vector<1x2x128xf32>
    %c2_i32 = arith.constant 2 : i32
    %47 = vector.broadcast %c2_i32 : i32 to vector<1x2x128xi32>
    %48 = arith.cmpi eq, %15, %47 : vector<1x2x128xi32>
    %49 = arith.select %48, %44, %38 : vector<1x2x128xi1>, vector<1x2x128xf32>
    %50 = arith.select %48, %45, %39 : vector<1x2x128xi1>, vector<1x2x128xf32>
    %cst_35 = arith.constant 3.000000e-01 : f32
    %51 = vector.broadcast %cst_35 : f32 to vector<1x2x128xf32>
    %52 = arith.select %48, %51, %41 : vector<1x2x128xi1>, vector<1x2x128xf32>
    %c0_36 = arith.constant 0 : index
    %c3_37 = arith.constant 3 : index
    %c0_38 = arith.constant 0 : index
    %c0_39 = arith.constant 0 : index
    %53 = vector.load %arg2[%c0_36, %c3_37, %c0_38, %c0_39] : memref<1x4x2x128xf32, #tpu.memory_space<vmem>>, vector<1x1x2x128xf32>
    %54 = vector.shape_cast %53 : vector<1x1x2x128xf32> to vector<1x2x128xf32>
    %55 = arith.subf %54, %13 : vector<1x2x128xf32>
    %56 = math.exp %55 : vector<1x2x128xf32>
    %57 = arith.addf %46, %56 : vector<1x2x128xf32>
    %c3_i32 = arith.constant 3 : i32
    %58 = vector.broadcast %c3_i32 : i32 to vector<1x2x128xi32>
    %59 = arith.cmpi eq, %15, %58 : vector<1x2x128xi32>
    %60 = arith.select %59, %55, %49 : vector<1x2x128xi1>, vector<1x2x128xf32>
    %61 = arith.select %59, %56, %50 : vector<1x2x128xi1>, vector<1x2x128xf32>
    %cst_40 = arith.constant 4.000000e-01 : f32
    %62 = vector.broadcast %cst_40 : f32 to vector<1x2x128xf32>
    %63 = arith.select %59, %62, %52 : vector<1x2x128xi1>, vector<1x2x128xf32>
    %64 = math.log %57 : vector<1x2x128xf32>
    %65 = arith.subf %60, %64 : vector<1x2x128xf32>
    %66 = arith.divf %61, %57 : vector<1x2x128xf32>
    %67 = arith.mulf %65, %63 : vector<1x2x128xf32>
    %cst_41 = arith.constant 1.000000e+00 : f32
    %68 = vector.broadcast %cst_41 : f32 to vector<1x2x128xf32>
    %69 = arith.subf %68, %66 : vector<1x2x128xf32>
    %cst_42 = arith.constant 0.000000e+00 : f32
    %70 = vector.broadcast %cst_42 : f32 to vector<1x2x128xf32>
    %71 = arith.maximumf %69, %70 : vector<1x2x128xf32>
    %72 = arith.mulf %71, %71 : vector<1x2x128xf32>
    %cst_43 = arith.constant -1.000000e+00 : f32
    %73 = vector.broadcast %cst_43 : f32 to vector<1x2x128xf32>
    %74 = arith.mulf %73, %72 : vector<1x2x128xf32>
    %75 = arith.mulf %74, %67 : vector<1x2x128xf32>
    %c0_44 = arith.constant 0 : index
    %c0_45 = arith.constant 0 : index
    %c0_46 = arith.constant 0 : index
    %76 = vector.load %arg4[%c0_44, %c0_45, %c0_46] : memref<1x1x128xf32, #tpu.memory_space<vmem>>, vector<1x1x128xf32>
    %77 = vector.shape_cast %76 : vector<1x1x128xf32> to vector<1x128xf32>
    %cst_47 = arith.constant dense<0.000000e+00> : vector<1x128xf32>
    %78 = vector.multi_reduction <add>, %75, %cst_47 [1] : vector<1x2x128xf32> to vector<1x128xf32>
    %79 = arith.addf %77, %78 : vector<1x128xf32>
    %c0_48 = arith.constant 0 : index
    %c0_49 = arith.constant 0 : index
    %c0_50 = arith.constant 0 : index
    %80 = vector.load %arg4[%c0_48, %c0_49, %c0_50] : memref<1x1x128xf32, #tpu.memory_space<vmem>>, vector<1x1x128xf32>
    %81 = vector.shape_cast %80 : vector<1x1x128xf32> to vector<1x128xf32>
    %82 = vector.shape_cast %79 : vector<1x128xf32> to vector<1x1x128xf32>
    tpu.vector_store %arg4[%c0_48, %c0_49, %c0_50], %82 {strides = array<i32>} : memref<1x1x128xf32, #tpu.memory_space<vmem>>, vector<1x1x128xf32>,
    return
  }
  func.func @transform_0(%arg0: i32, %arg1: i32) -> (i32, i32, i32, i32) {
    %c0_i32 = arith.constant 0 : i32
    %c0_i32_0 = arith.constant 0 : i32
    %c0_i32_1 = arith.constant 0 : i32
    return %arg0, %c0_i32, %arg1, %c0_i32_0 : i32, i32, i32, i32
  }
  func.func @transform_1(%arg0: i32, %arg1: i32) -> (i32, i32, i32, i32) {
    %c0_i32 = arith.constant 0 : i32
    %c0_i32_0 = arith.constant 0 : i32
    %c0_i32_1 = arith.constant 0 : i32
    return %arg0, %c0_i32, %arg1, %c0_i32_0 : i32, i32, i32, i32
  }
  func.func @transform_2(%arg0: i32, %arg1: i32) -> (i32, i32, i32) {
    %c0_i32 = arith.constant 0 : i32
    %c0_i32_0 = arith.constant 0 : i32
    %c0_i32_1 = arith.constant 0 : i32
    return %arg0, %c0_i32, %c0_i32_0 : i32, i32, i32
  }
}

</mosaic_0001>

<llo_original>
// kernel: tpu_custom_call.1
$region0: #{tpu_custom_call.1}
  #allocation0 [shape = 'u32[]', space=smem, size = 0x4, offset = 0x4, fixed_abs, tag = 'smem constant byte address 0x4 - core index']
  #allocation1 [shape = 'u32[144,128]{1,0:T(1,128)}', space=vmem, size = 0x12000, scoped, tag = 'internal scratch']
  %s0 = inlined_call_operand.hbm [shape: f32[2,4,2,128], index: 0, kind: input, shape index: {}]
  %s1 = inlined_call_operand.hbm [shape: s32[2,1,2,128], index: 1, kind: input, shape index: {}]
  %s2 = inlined_call_operand.hbm [shape: f32[2,1,128], index: 2, kind: output, shape index: {}]
  %s3 = sld [smem:[#allocation0]]
  $region53: #{tpu_custom_call.1} parent=0
    _
  %s5 = ssub.s32 1, %s3
  %s6 = scalar_select 0, %s5, %s3
  $region1: #{tpu_custom_call.1} parent=0
    #allocation2 [shape = 'u8[8192]{0}', space=vmem, size = 0x2000, scoped, tag = 'input window, operand 0']
    #allocation3 [shape = 's32[2]{0}', space=sflag, size = 0x8, scoped, tag = 'scoped memory for tpu_custom_call.1']
    #allocation4 [shape = 's32[2]{0}', space=sflag, size = 0x8, scoped, tag = 'scoped memory for tpu_custom_call.1']
    #allocation5 [shape = 'u8[2048]{0}', space=vmem, size = 0x800, scoped, tag = 'input window, operand 1']
    #allocation6 [shape = 's32[2]{0}', space=sflag, size = 0x8, scoped, tag = 'scoped memory for tpu_custom_call.1']
    #allocation7 [shape = 'u8[1024]{0}', space=vmem, size = 0x400, scoped, tag = 'output window, operand 0']
    %7 = vsyncpa [#allocation3], 0
    %s8 = scalar_lea.sflag [#allocation3], 1
    %9 = vsyncpa %s8, 0
    %10 = vsyncpa [#allocation6], 0
    %s11 = scalar_lea.sflag [#allocation6], 1
    %12 = vsyncpa %s11, 0
    %13 = vsyncpa [#allocation4], 0
    %s14 = scalar_lea.sflag [#allocation4], 1
    %15 = vsyncpa %s14, 0
    loop: start=0, step=1, limit=4
    $region2: #{tpu_custom_call.1} parent=1 // loop_pre_header
      _
    $region3: #{tpu_custom_call.1} parent=1 // loop_header
      %s17 = sphi 0, %s21
      %p18 = scmp.ge.s32.totalorder %s17, 4
      %s24 = sphi 0, %s36
      %s25 = sphi 0, %s32
      %s26 = sphi 0, %s24
      %s27 = sphi 0, %s25
      %s28 = sphi 0, %s26
      %s29 = sphi 0, %s27
      %s41 = sphi 0, %s43
      %s44 = sphi 0, %s41
      %s45 = sphi 0, %s44
      %s61 = sphi 0, %s45
      %s69 = sphi 0, %s71
      %s72 = sphi 0, %s69
      %s73 = sphi 0, %s72
      %s89 = sphi 0, %s73
      %s95 = sphi 0, %s97
      %s98 = sphi 0, %s95
      %s99 = sphi 0, %s98
      %s115 = sphi 0, %s99
    $region4: #{tpu_custom_call.1} parent=1 // loop_header_branch
      %20 = sbr.rel (%p18) target = $region8
    $region5: #{tpu_custom_call.1} parent=1 // loop_body
      %s22 = ssub.s32 %s17, 1
      %s23 = ssub.s32 %s17, 2
      %s30 = sadd.s32 1, %s25
      %p31 = scmp.ge.s32.totalorder %s30, 1
      %s32 = scalar_select %p31, 0, %s30
      %s33 = sadd.s32 1, %s24
      %s34 = scalar_select %p31, %s33, %s24
      %p35 = scmp.ge.s32.totalorder %s34, 2
      %s36 = scalar_select %p35, 0, %s34
      %s37 = ssub.s32 %s24, %s36
      %s38 = ssub.s32 %s25, %s32
      %s39 = sor.u32 %s37, %s38
      %p40 = scmp.eq.s32.totalorder %s39, 0
      %s42 = sadd.s32 %s41, 1
      %s43 = scalar_select %p40, %s41, %s42
      %p46 = pneg %p40
      %p47 = scmp.eq.s32.totalorder %s17, 1
      %p48 = por %p46, %p47
      %p49 = scmp.ne.s32.totalorder %s41, %s44
      %p50 = scmp.eq.s32.totalorder %s17, 0
      %p51 = por %p49, %p50
      %p52 = scmp.ne.s32.totalorder %s41, %s44
      %p53 = scmp.eq.s32.totalorder %s22, 1
      %p54 = por %p52, %p53
      %p55 = scmp.ne.s32.totalorder %s44, %s45
      %p56 = scmp.eq.s32.totalorder %s22, 0
      %p57 = por %p55, %p56
      %p58 = scmp.ne.s32.totalorder %s44, %s45
      %p59 = scmp.eq.s32.totalorder %s23, 1
      %p60 = por %p58, %p59
      %p62 = scmp.ne.s32.totalorder %s45, %s61
      %p63 = scmp.eq.s32.totalorder %s23, 0
      %p64 = por %p62, %p63
      %s65 = ssub.s32 %s24, %s36
      %s66 = ssub.s32 %s25, %s32
      %s67 = sor.u32 %s65, %s66
      %p68 = scmp.eq.s32.totalorder %s67, 0
      %s70 = sadd.s32 %s69, 1
      %s71 = scalar_select %p68, %s69, %s70
      %p74 = pneg %p68
      %p75 = scmp.eq.s32.totalorder %s17, 1
      %p76 = por %p74, %p75
      %p77 = scmp.ne.s32.totalorder %s69, %s72
      %p78 = scmp.eq.s32.totalorder %s17, 0
      %p79 = por %p77, %p78
      %p80 = scmp.ne.s32.totalorder %s69, %s72
      %p81 = scmp.eq.s32.totalorder %s22, 1
      %p82 = por %p80, %p81
      %p83 = scmp.ne.s32.totalorder %s72, %s73
      %p84 = scmp.eq.s32.totalorder %s22, 0
      %p85 = por %p83, %p84
      %p86 = scmp.ne.s32.totalorder %s72, %s73
      %p87 = scmp.eq.s32.totalorder %s23, 1
      %p88 = por %p86, %p87
      %p90 = scmp.ne.s32.totalorder %s73, %s89
      %p91 = scmp.eq.s32.totalorder %s23, 0
      %p92 = por %p90, %p91
      %s93 = ssub.s32 %s24, %s36
      %p94 = scmp.eq.s32.totalorder %s93, 0
      %s96 = sadd.s32 %s95, 1
      %s97 = scalar_select %p94, %s95, %s96
      %p100 = pneg %p94
      %p101 = scmp.eq.s32.totalorder %s17, 1
      %p102 = por %p100, %p101
      %p103 = scmp.ne.s32.totalorder %s95, %s98
      %p104 = scmp.eq.s32.totalorder %s17, 0
      %p105 = por %p103, %p104
      %p106 = scmp.ne.s32.totalorder %s95, %s98
      %p107 = scmp.eq.s32.totalorder %s22, 1
      %p108 = por %p106, %p107
      %p109 = scmp.ne.s32.totalorder %s98, %s99
      %p110 = scmp.eq.s32.totalorder %s22, 0
      %p111 = por %p109, %p110
      %p112 = scmp.ne.s32.totalorder %s98, %s99
      %p113 = scmp.eq.s32.totalorder %s23, 1
      %p114 = por %p112, %p113
      %p116 = scmp.ne.s32.totalorder %s99, %s115
      %p117 = scmp.eq.s32.totalorder %s23, 0
      %p118 = por %p116, %p117
      %p119 = scmp.le.s32.totalorder 1, %s17
      %p120 = scmp.lt.s32.totalorder %s17, 3
      %p121 = pnand %p119, %p120
      %p122 = pneg %p121
      // Predicated region
      $region9: #{tpu_custom_call.1} parent=5 // pred_check
        _
      $region10: #{tpu_custom_call.1} parent=5 // pred_check_branch
        %124 = sbr.rel (%p121) target = $region12
      $region11: #{tpu_custom_call.1} parent=5 // pred_region
        %s125 = ssub.s32 %s17, 1
      $region12: #{tpu_custom_call.1} parent=5 // pred_fallthru
        _
      %p126 = scmp.lt.s32.totalorder %s17, 2
      // Predicated region
      $region13: #{tpu_custom_call.1} parent=5 // pred_check
        %p127 = pneg %p126
      $region14: #{tpu_custom_call.1} parent=5 // pred_check_branch
        %129 = sbr.rel (%p127) target = $region16
      $region15: #{tpu_custom_call.1} parent=5 // pred_region
        // Predicated region
        $region17: #{tpu_custom_call.1} parent=15 // pred_check
          %p130 = pneg %p51
        $region18: #{tpu_custom_call.1} parent=15 // pred_check_branch
          %132 = sbr.rel (%p130) target = $region20
        $region19: #{tpu_custom_call.1} parent=15 // pred_region
          %s133 = sand.u32 %s41, 1
          %s134 = scalar_lea.sflag [#allocation3], %s133
          %s135 = sand.u32 %s41, 1
          %s136 = smul.addr %s135, 8
          %s137 = scalar_lea.vmem [#allocation2], %s136
          %s139 = ssub.s32 128, 128
          %140 = vsyncadd %s134, %s139
          %s141 = smul.addr %s24, 4
          %s142 = sadd.s32 %s25, %s141
          %s143 = smul.addr %s142, 32
          %s144 = scalar_lea.hbm %s0, %s143
          %s145 = sshll.u32 %s137, 4
          %s146 = int_to_ptr.vmem [resolvable:$true] %s145
          %151 = dma.hbm_to_vmem [thread:$0]  %s144, 128, %s146, %s134, 32, 32, 2
        $region20: #{tpu_custom_call.1} parent=15 // pred_fallthru
          _
        // Predicated region
        $region21: #{tpu_custom_call.1} parent=15 // pred_check
          %p152 = pneg %p79
        $region22: #{tpu_custom_call.1} parent=15 // pred_check_branch
          %154 = sbr.rel (%p152) target = $region24
        $region23: #{tpu_custom_call.1} parent=15 // pred_region
          %s155 = sand.u32 %s69, 1
          %s156 = scalar_lea.sflag [#allocation6], %s155
          %s157 = sand.u32 %s69, 1
          %s158 = smul.addr %s157, 2
          %s159 = scalar_lea.vmem [#allocation5], %s158
          %s161 = ssub.s32 32, 32
          %162 = vsyncadd %s156, %s161
          %s163 = sadd.s32 %s25, %s24
          %s164 = smul.addr %s163, 32
          %s165 = scalar_lea.hbm %s1, %s164
          %s167 = sshll.u32 %s159, 4
          %s168 = int_to_ptr.vmem [resolvable:$true] %s167
          %170 = dma.hbm_to_vmem [thread:$0]  %s165, 32, %s168, %s156
        $region24: #{tpu_custom_call.1} parent=15 // pred_fallthru
          _
      $region16: #{tpu_custom_call.1} parent=5 // pred_fallthru
        _
      %p171 = scmp.le.s32.totalorder 1, %s17
      %p172 = scmp.lt.s32.totalorder %s17, 3
      %p173 = pnand %p171, %p172
      %p174 = pneg %p173
      // Predicated region
      $region25: #{tpu_custom_call.1} parent=5 // pred_check
        _
      $region26: #{tpu_custom_call.1} parent=5 // pred_check_branch
        %176 = sbr.rel (%p173) target = $region28
      $region27: #{tpu_custom_call.1} parent=5 // pred_region
        %s177 = ssub.s32 %s17, 1
        %s178 = sand.u32 %s44, 1
        %s179 = scalar_lea.sflag [#allocation3], %s178
        %s180 = sand.u32 %s44, 1
        %s181 = smul.addr %s180, 8
        %s182 = scalar_lea.vmem [#allocation2], %s181
        // Predicated region
        $region29: #{tpu_custom_call.1} parent=27 // pred_check
          %p183 = pneg %p57
        $region30: #{tpu_custom_call.1} parent=27 // pred_check_branch
          %185 = sbr.rel (%p183) target = $region32
        $region31: #{tpu_custom_call.1} parent=27 // pred_region
          %186 = dma.done %s179, 128
        $region32: #{tpu_custom_call.1} parent=27 // pred_fallthru
          _
        %s187 = sand.u32 %s72, 1
        %s188 = scalar_lea.sflag [#allocation6], %s187
        %s189 = sand.u32 %s72, 1
        %s190 = smul.addr %s189, 2
        %s191 = scalar_lea.vmem [#allocation5], %s190
        // Predicated region
        $region33: #{tpu_custom_call.1} parent=27 // pred_check
          %p192 = pneg %p85
        $region34: #{tpu_custom_call.1} parent=27 // pred_check_branch
          %194 = sbr.rel (%p192) target = $region36
        $region35: #{tpu_custom_call.1} parent=27 // pred_region
          %195 = dma.done %s188, 32
        $region36: #{tpu_custom_call.1} parent=27 // pred_fallthru
          _
        %s196 = sand.u32 %s44, 1
        %s197 = scalar_lea.sflag [#allocation3], %s196
        %s198 = sand.u32 %s44, 1
        %s199 = smul.addr %s198, 8
        %s200 = scalar_lea.vmem [#allocation2], %s199
        %p201 = pneg %p57
        %p202 = pneg %p54
        %s203 = sand.u32 %s72, 1
        %s204 = scalar_lea.sflag [#allocation6], %s203
        %s205 = sand.u32 %s72, 1
        %s206 = smul.addr %s205, 2
        %s207 = scalar_lea.vmem [#allocation5], %s206
        %p208 = pneg %p85
        %p209 = pneg %p82
        %p210 = pneg %p111
        %p211 = pneg %p108
        %s212 = sand.u32 %s98, 1
        %s213 = scalar_lea.sflag [#allocation4], %s212
        %s214 = sand.u32 %s98, 1
        %s215 = scalar_lea.vmem [#allocation7], %s214
        %p216 = scmp.eq.s32.totalorder %s27, 0
        // Predicated region
        $region37: #{tpu_custom_call.1} parent=27 // pred_check
          %p217 = pneg %p216
        $region38: #{tpu_custom_call.1} parent=27 // pred_check_branch
          %219 = sbr.rel (%p217) target = $region40
        $region39: #{tpu_custom_call.1} parent=27 // pred_region
          %220 = vst [vmem:[%s215] sm:$0x1] 0.0
        $region40: #{tpu_custom_call.1} parent=27 // pred_fallthru
          _
        %v221 = vld [vmem:[%s182] sm:$0x3]
        %s222 = scalar_lea.vmem %s182, 2 [#allocation2]
        %v223 = vld [vmem:[%s222] sm:$0x3]
        %v224 = vmax.f32 %v221, %v223
        %s225 = scalar_lea.vmem %s182, 4 [#allocation2]
        %v226 = vld [vmem:[%s225] sm:$0x3]
        %v227 = vmax.f32 %v224, %v226
        %s228 = scalar_lea.vmem %s182, 6 [#allocation2]
        %v229 = vld [vmem:[%s228] sm:$0x3]
        %v230 = vmax.f32 %v227, %v229
        %v231 = vld [vmem:[%s191] sm:$0x3]
        %v232 = vsub.f32 %v221, %v230
        %v233 = vmul.f32 %v232, 1.442695
        %v234 = vpow.pop %v233
        %v235 = vadd.f32 %v234, 0.0
        %vm236 = vcmp.eq.s32.totalorder %v231, 0
        %v237 = vsel %vm236, %v232, 0.0
        %v238 = vsel %vm236, %v234, 0.0
        %v239 = vsel %vm236, 0.1, 0.0
        %v240 = vsub.f32 %v223, %v230
        %v241 = vmul.f32 %v240, 1.442695
        %v242 = vpow.pop %v241
        %v243 = vadd.f32 %v235, %v242
        %vm244 = vcmp.eq.s32.totalorder %v231, 1
        %v245 = vsel %vm244, %v240, %v237
        %v246 = vsel %vm244, %v242, %v238
        %v247 = vsel %vm244, 0.2, %v239
        %v248 = vsub.f32 %v226, %v230
        %v249 = vmul.f32 %v248, 1.442695
        %v250 = vpow.pop %v249
        %v251 = vadd.f32 %v243, %v250
        %vm252 = vcmp.eq.s32.totalorder %v231, 2
        %v253 = vsel %vm252, %v248, %v245
        %v254 = vsel %vm252, %v250, %v246
        %v255 = vsel %vm252, 0.3, %v247
        %v256 = vsub.f32 %v229, %v230
        %v257 = vmul.f32 %v256, 1.442695
        %v258 = vpow.pop %v257
        %v259 = vadd.f32 %v251, %v258
        %vm260 = vcmp.eq.s32.totalorder %v231, 3
        %v261 = vsel %vm260, %v256, %v253
        %v262 = vsel %vm260, %v258, %v254
        %v263 = vsel %vm260, 0.4, %v255
        %v264 = vlog2.pop %v259
        %v265 = vmul.f32 %v264, 0.6931472
        %v266 = vsub.f32 %v261, %v265
        %v267 = vrcp.pop %v259
        %v268 = vmul.f32 %v262, %v267
        %v269 = vmul.f32 %v266, %v263
        %v270 = vsub.f32 1.0, %v268
        %v271 = vmax.f32 %v270, 0.0
        %v272 = vmul.f32 %v271, %v271
        %v273 = vmul.f32 %v272, -1.0
        %v274 = vmul.f32 %v273, %v269
        %v275 = vld [vmem:[%s215] sm:$0x1]
        %vm276 = vcmask 1041408
        %v277 = vsel %vm276, %v274, 0.0
        %v278 = vrot.slane %v277, 4
        %v279 = vadd.f32 %v277, %v278
        %v280 = vrot.slane %v279, 2
        %v281 = vadd.f32 %v279, %v280
        %v282 = vrot.slane %v281, 1
        %v283 = vadd.f32 %v281, %v282
        %v284 = vadd.f32 %v275, %v283
        %285 = vst [vmem:[%s215] sm:$0x1] %v284
        %s286 = sand.u32 %s98, 1
        %s287 = scalar_lea.sflag [#allocation4], %s286
        %s288 = sand.u32 %s98, 1
        %s289 = scalar_lea.vmem [#allocation7], %s288
        // Predicated region
        $region41: #{tpu_custom_call.1} parent=27 // pred_check
          %p290 = pneg %p108
        $region42: #{tpu_custom_call.1} parent=27 // pred_check_branch
          %292 = sbr.rel (%p290) target = $region44
        $region43: #{tpu_custom_call.1} parent=27 // pred_region
          %s294 = ssub.s32 16, 16
          %295 = vsyncadd %s287, %s294
          %s296 = smul.addr %s26, 16
          %s297 = scalar_lea.hbm %s2, %s296
          %s299 = sshll.u32 %s289, 4
          %s300 = int_to_ptr.vmem [resolvable:$true] %s299
          %302 = dma.vmem_to_hbm [thread:$0]  %s300, 16, %s297, %s287
        $region44: #{tpu_custom_call.1} parent=27 // pred_fallthru
          _
      $region28: #{tpu_custom_call.1} parent=5 // pred_fallthru
        _
      %p303 = scmp.le.s32.totalorder 2, %s17
      // Predicated region
      $region45: #{tpu_custom_call.1} parent=5 // pred_check
        %p304 = pneg %p303
      $region46: #{tpu_custom_call.1} parent=5 // pred_check_branch
        %306 = sbr.rel (%p304) target = $region48
      $region47: #{tpu_custom_call.1} parent=5 // pred_region
        %s307 = ssub.s32 %s17, 2
        // Predicated region
        $region49: #{tpu_custom_call.1} parent=47 // pred_check
          %p308 = pneg %p114
        $region50: #{tpu_custom_call.1} parent=47 // pred_check_branch
          %310 = sbr.rel (%p308) target = $region52
        $region51: #{tpu_custom_call.1} parent=47 // pred_region
          %s311 = sand.u32 %s99, 1
          %s312 = scalar_lea.sflag [#allocation4], %s311
          %s313 = sand.u32 %s99, 1
          %s314 = scalar_lea.vmem [#allocation7], %s313
          %315 = dma.done %s312, 16
        $region52: #{tpu_custom_call.1} parent=47 // pred_fallthru
          _
      $region48: #{tpu_custom_call.1} parent=5 // pred_fallthru
        _
    $region6: #{tpu_custom_call.1} parent=1 // loop_footer
      %s21 = sadd.s32 1, %s17
    $region7: #{tpu_custom_call.1} parent=1 // loop_footer_branch
      %16 = sbr.rel target = $region3
    $region8: #{tpu_custom_call.1} parent=1 // loop_exit
      _
    %316 = vsyncpa [#allocation3], 1
    %s317 = scalar_lea.sflag [#allocation3], 1
    %318 = vsyncpa %s317, 1
    %319 = vsyncpa [#allocation6], 1
    %s320 = scalar_lea.sflag [#allocation6], 1
    %321 = vsyncpa %s320, 1
    %322 = vsyncpa [#allocation4], 1
    %s323 = scalar_lea.sflag [#allocation4], 1
    %324 = vsyncpa %s323, 1

</llo_original>
